<compile_context>
chip_gen: v5e
topology: v5e:2x2
jax: 0.10.0
libtpu: 0.0.40
codegen_flags: <defaults>
</compile_context>

<pallas_src>
import functools

import jax
import jax.numpy as jnp
from jax.experimental import pallas as pl
from jax.experimental.pallas import tpu as pltpu


def _round_up(x, m):
    return ((x + m - 1) // m) * m


def _fused_mlp_kernel(*refs, num_layers, negative_slope):
    """Fused MLP: chain of (h @ W + b), LeakyReLU on all but the last layer.

    refs = (x_ref, w0_ref, b0_ref, w1_ref, b1_ref, ..., o_ref)
    Static Python unroll over layers; intermediates never leave VMEM/vregs.
    """
    x_ref = refs[0]
    o_ref = refs[-1]
    wb = refs[1:-1]

    h = x_ref[...]
    for i in range(num_layers):
        w = wb[2 * i][...]
        b = wb[2 * i + 1][...]
        # MXU matmul with f32 accumulation; cast h to weight dtype (no-op for f32,
        # enables the bf16 weight path on v6e/v7x without touching the kernel).
        y = jnp.dot(h.astype(w.dtype), w, preferred_element_type=jnp.float32)
        y = y + b.astype(jnp.float32)          # (tm, out) + (1, out) broadcast
        if i < num_layers - 1:
            # LeakyReLU (0 < slope < 1): mul + max, one fewer VALU op than cmp+select.
            y = jnp.maximum(y, negative_slope * y)
        h = y
    o_ref[...] = h.astype(o_ref.dtype)


def prepare_params(params, weight_dtype=None):
    """One-time parameter prep (call OUTSIDE the step function).

    params: list of (w [in, out], b [1, out]).  Optionally casts to bf16 for v6e/v7x
    (halves weight VMEM + DMA, feeds the 256x256 bf16 MXU).  No padding is needed:
    full-array BlockSpec blocks are exempt from the (8,128) tiling rule.
    """
    prepared = []
    for w, b in params:
        if weight_dtype is not None:
            w = w.astype(weight_dtype)
            b = b.astype(weight_dtype)
        prepared.append((jnp.asarray(w), jnp.asarray(b)))
    return prepared


def _forward_impl(prepared, x, negative_slope, tm, single_buffer_weights, vmem_limit):
    num_layers = len(prepared)
    B, in_f = x.shape
    out_f = prepared[-1][0].shape[1]

    # Grid-invariant weights/biases: keep them resident; request 1-deep buffering.
    wkw = {"pipeline_mode": pl.Buffered(1)} if single_buffer_weights else {}

    in_specs = [pl.BlockSpec((tm, in_f), lambda i: (i, 0))]
    flat_args = [x]
    for w, b in prepared:
        in_specs.append(pl.BlockSpec(w.shape, lambda i: (0, 0), **wkw))
        in_specs.append(pl.BlockSpec(b.shape, lambda i: (0, 0), **wkw))
        flat_args += [w, b]
    out_spec = pl.BlockSpec((tm, out_f), lambda i: (i, 0))

    flops = 2 * B * sum(w.shape[0] * w.shape[1] for w, _ in prepared)
    bytes_accessed = (
        x.size * x.dtype.itemsize
        + sum(w.size * w.dtype.itemsize + b.size * b.dtype.itemsize for w, b in prepared)
        + B * out_f * x.dtype.itemsize
    )

    kernel = functools.partial(
        _fused_mlp_kernel, num_layers=num_layers, negative_slope=negative_slope
    )

    return pl.pallas_call(
        kernel,
        out_shape=jax.ShapeDtypeStruct((B, out_f), x.dtype),
        grid=(pl.cdiv(B, tm),),
        in_specs=in_specs,
        out_specs=out_spec,
        compiler_params=pltpu.CompilerParams(
            dimension_semantics=("parallel",),
            vmem_limit_bytes=vmem_limit,
        ),
        cost_estimate=pl.CostEstimate(
            flops=flops, transcendentals=0, bytes_accessed=bytes_accessed
        ),
    )(*flat_args)


def simplenet_forward(prepared, x, negative_slope=0.01, *, tm_max=512):
    """Forward pass of SimpleNet as a single fused Pallas kernel.

    prepared: output of prepare_params(); x: [B, input_size].  Returns [B, output_size].
    """
    B, in_f = x.shape
    out_f = prepared[-1][0].shape[1]

    # Pad batch to a sublane multiple only if needed (no-op for typical batches).
    pad_rows = (-B) % 8
    x_run = jnp.pad(x, ((0, pad_rows), (0, 0))) if pad_rows else x
    B_eff = x_run.shape[0]

    # Batch tile: multiple of 8, capped at tm_max (bounds vreg live range of the
    # inter-layer activation).  Ensure >=2 grid steps when the batch allows so both
    # v7x TensorCores get work on the "parallel" axis.
    tm = min(_round_up(B_eff, 8), tm_max)
    if pl.cdiv(B_eff, tm) < 2 and B_eff >= 16:
        tm = _round_up(pl.cdiv(B_eff, 2), 8)

    # Explicit VMEM budget: resident weights dominate; x/out tiles are double-buffered.
    def _tile_bytes(r, c, itemsize):
        return _round_up(max(r, 1), 8) * _round_up(max(c, 1), 128) * itemsize

    w_bytes = sum(
        _tile_bytes(w.shape[0], w.shape[1], w.dtype.itemsize)
        + _tile_bytes(1, b.shape[1], b.dtype.itemsize)
        for w, b in prepared
    )
    act_bytes = 2 * _tile_bytes(tm, in_f, x.dtype.itemsize) + 2 * _tile_bytes(
        tm, out_f, x.dtype.itemsize
    )
    budget = 2 * w_bytes + act_bytes  # worst case: double-buffered weights (fallback path)
    vmem_limit = int(min(max(budget * 3 // 2, 32 << 20), 64 << 20))
    # TODO(synk): if `budget` exceeds ~64 MiB (v7x physical VMEM), the resident-weight
    # scheme no longer fits; add an out-feature-tiled (second grid axis) path.

    try:
        out = _forward_impl(prepared, x_run, negative_slope, tm, True, vmem_limit)
    except Exception:
        # pipeline_mode=pl.Buffered(1) unsupported on this jax build -> default buffering.
        out = _forward_impl(prepared, x_run, negative_slope, tm, False, vmem_limit)

    return out[:B] if pad_rows else out


def init_simplenet_params(key, input_size, hidden_layer_sizes, output_size,
                          dtype=jnp.float32):
    """Deterministic init mimicking nn.Linear's default (uniform ±1/sqrt(fan_in))."""
    sizes = [input_size] + list(hidden_layer_sizes) + [output_size]
    params = []
    for i in range(len(sizes) - 1):
        fan_in, fan_out = sizes[i], sizes[i + 1]
        key, kw, kb = jax.random.split(key, 3)
        bound = 1.0 / jnp.sqrt(float(fan_in))
        # stored as [in, out] (transpose of PyTorch nn.Linear layout)
        w = jax.random.uniform(kw, (fan_in, fan_out), dtype, -bound, bound)
        b = jax.random.uniform(kb, (1, fan_out), dtype, -bound, bound)
        params.append((w, b))
    return params


def simplenet_ref(params, x, negative_slope=0.01):
    """Pure-JAX reference for correctness check."""
    n = len(params)
    for i, (w, b) in enumerate(params):
        x = x @ w + b
        if i < n - 1:
            x = jnp.where(x > 0, x, negative_slope * x)
    return x


if __name__ == "__main__":
    # Small shapes consistent with the module: SimpleNet(input_size=32,
    # hidden_layer_sizes=[64, 32], output_size=16), batch=8.
    input_size = 32
    hidden_layer_sizes = [64, 32]
    output_size = 16
    batch = 8

    key = jax.random.PRNGKey(0)
    key, kx = jax.random.split(key)
    x = jax.random.normal(kx, (batch, input_size), jnp.float32)

    params = init_simplenet_params(key, input_size, hidden_layer_sizes, output_size)
    prepared = prepare_params(params)          # one-time prep, outside the step

    out = simplenet_forward(prepared, x)
    out = jax.block_until_ready(out)

    ref = simplenet_ref(params, x)
    assert out.shape == (batch, output_size)
    assert jnp.allclose(out, ref, atol=1e-5, rtol=1e-5), "mismatch vs reference"

    print("KERNEL_OK")
</pallas_src>

<mosaic_0001>
module attributes {stable_mosaic.version = 11 : i64} {
  func.func @_fused_mlp_kernel(%arg0: i32, %arg1: memref<8x32xf32, #tpu.memory_space<vmem>>, %arg2: memref<32x64xf32, #tpu.memory_space<vmem>>, %arg3: memref<1x64xf32, #tpu.memory_space<vmem>>, %arg4: memref<64x32xf32, #tpu.memory_space<vmem>>, %arg5: memref<1x32xf32, #tpu.memory_space<vmem>>, %arg6: memref<32x16xf32, #tpu.memory_space<vmem>>, %arg7: memref<1x16xf32, #tpu.memory_space<vmem>>, %arg8: memref<8x16xf32, #tpu.memory_space<vmem>>) attributes {dimension_semantics = [#tpu.dimension_semantics<parallel>], iteration_bounds = array<i64: 1>, scalar_prefetch = 0 : i64, scratch_operands = 0 : i64, tpu.core_type = #tpu.core_type<tc>, window_params = [{transform_indices = @transform_0, window_bounds = array<i64: 8, 32>}, {pipeline_mode = #tpu.pipeline_mode<synchronous>, transform_indices = @transform_1, window_bounds = array<i64: 32, 64>}, {pipeline_mode = #tpu.pipeline_mode<synchronous>, transform_indices = @transform_2, window_bounds = array<i64: 1, 64>}, {pipeline_mode = #tpu.pipeline_mode<synchronous>, transform_indices = @transform_3, window_bounds = array<i64: 64, 32>}, {pipeline_mode = #tpu.pipeline_mode<synchronous>, transform_indices = @transform_4, window_bounds = array<i64: 1, 32>}, {pipeline_mode = #tpu.pipeline_mode<synchronous>, transform_indices = @transform_5, window_bounds = array<i64: 32, 16>}, {pipeline_mode = #tpu.pipeline_mode<synchronous>, transform_indices = @transform_6, window_bounds = array<i64: 1, 16>}, {transform_indices = @transform_7, window_bounds = array<i64: 8, 16>}]} {
    %c0 = arith.constant 0 : index
    %c0_0 = arith.constant 0 : index
    %0 = vector.load %arg1[%c0, %c0_0] : memref<8x32xf32, #tpu.memory_space<vmem>>, vector<8x32xf32>
    %c0_1 = arith.constant 0 : index
    %c0_2 = arith.constant 0 : index
    %1 = vector.load %arg2[%c0_1, %c0_2] : memref<32x64xf32, #tpu.memory_space<vmem>>, vector<32x64xf32>
    %c0_3 = arith.constant 0 : index
    %c0_4 = arith.constant 0 : index
    %2 = vector.load %arg3[%c0_3, %c0_4] : memref<1x64xf32, #tpu.memory_space<vmem>>, vector<1x64xf32>
    %cst = arith.constant dense<0.000000e+00> : vector<8x64xf32>
    %3 = tpu.matmul %0, %1, %cst {dimension_numbers = #tpu.dot_dimension_numbers<[1], [0], [0], [1], [0, 0, 1, 1], [], []>} : vector<8x32xf32>, vector<32x64xf32>, vector<8x64xf32> -> vector<8x64xf32>
    %4 = vector.broadcast %2 : vector<1x64xf32> to vector<8x64xf32>
    %5 = arith.addf %3, %4 : vector<8x64xf32>
    %cst_5 = arith.constant 0.00999999977 : f32
    %6 = vector.broadcast %cst_5 : f32 to vector<8x64xf32>
    %7 = arith.mulf %6, %5 : vector<8x64xf32>
    %8 = arith.maximumf %5, %7 : vector<8x64xf32>
    %c0_6 = arith.constant 0 : index
    %c0_7 = arith.constant 0 : index
    %9 = vector.load %arg4[%c0_6, %c0_7] : memref<64x32xf32, #tpu.memory_space<vmem>>, vector<64x32xf32>
    %c0_8 = arith.constant 0 : index
    %c0_9 = arith.constant 0 : index
    %10 = vector.load %arg5[%c0_8, %c0_9] : memref<1x32xf32, #tpu.memory_space<vmem>>, vector<1x32xf32>
    %cst_10 = arith.constant dense<0.000000e+00> : vector<8x32xf32>
    %11 = tpu.matmul %8, %9, %cst_10 {dimension_numbers = #tpu.dot_dimension_numbers<[1], [0], [0], [1], [0, 0, 1, 1], [], []>} : vector<8x64xf32>, vector<64x32xf32>, vector<8x32xf32> -> vector<8x32xf32>
    %12 = vector.broadcast %10 : vector<1x32xf32> to vector<8x32xf32>
    %13 = arith.addf %11, %12 : vector<8x32xf32>
    %cst_11 = arith.constant 0.00999999977 : f32
    %14 = vector.broadcast %cst_11 : f32 to vector<8x32xf32>
    %15 = arith.mulf %14, %13 : vector<8x32xf32>
    %16 = arith.maximumf %13, %15 : vector<8x32xf32>
    %c0_12 = arith.constant 0 : index
    %c0_13 = arith.constant 0 : index
    %17 = vector.load %arg6[%c0_12, %c0_13] : memref<32x16xf32, #tpu.memory_space<vmem>>, vector<32x16xf32>
    %c0_14 = arith.constant 0 : index
    %c0_15 = arith.constant 0 : index
    %18 = vector.load %arg7[%c0_14, %c0_15] : memref<1x16xf32, #tpu.memory_space<vmem>>, vector<1x16xf32>
    %cst_16 = arith.constant dense<0.000000e+00> : vector<8x16xf32>
    %19 = tpu.matmul %16, %17, %cst_16 {dimension_numbers = #tpu.dot_dimension_numbers<[1], [0], [0], [1], [0, 0, 1, 1], [], []>} : vector<8x32xf32>, vector<32x16xf32>, vector<8x16xf32> -> vector<8x16xf32>
    %20 = vector.broadcast %18 : vector<1x16xf32> to vector<8x16xf32>
    %21 = arith.addf %19, %20 : vector<8x16xf32>
    %c0_17 = arith.constant 0 : index
    %c0_18 = arith.constant 0 : index
    %22 = vector.load %arg8[%c0_17, %c0_18] : memref<8x16xf32, #tpu.memory_space<vmem>>, vector<8x16xf32>
    tpu.vector_store %arg8[%c0_17, %c0_18], %21 {strides = array<i32>} : memref<8x16xf32, #tpu.memory_space<vmem>>, vector<8x16xf32>,
    return
  }
  func.func @transform_0(%arg0: i32) -> (i32, i32) {
    %c0_i32 = arith.constant 0 : i32
    %c0_i32_0 = arith.constant 0 : i32
    return %arg0, %c0_i32 : i32, i32
  }
  func.func @transform_1(%arg0: i32) -> (i32, i32) {
    %c0_i32 = arith.constant 0 : i32
    %c0_i32_0 = arith.constant 0 : i32
    %c0_i32_1 = arith.constant 0 : i32
    return %c0_i32, %c0_i32_0 : i32, i32
  }
  func.func @transform_2(%arg0: i32) -> (i32, i32) {
    %c0_i32 = arith.constant 0 : i32
    %c0_i32_0 = arith.constant 0 : i32
    %c0_i32_1 = arith.constant 0 : i32
    return %c0_i32, %c0_i32_0 : i32, i32
  }
  func.func @transform_3(%arg0: i32) -> (i32, i32) {
    %c0_i32 = arith.constant 0 : i32
    %c0_i32_0 = arith.constant 0 : i32
    %c0_i32_1 = arith.constant 0 : i32
    return %c0_i32, %c0_i32_0 : i32, i32
  }
  func.func @transform_4(%arg0: i32) -> (i32, i32) {
    %c0_i32 = arith.constant 0 : i32
    %c0_i32_0 = arith.constant 0 : i32
    %c0_i32_1 = arith.constant 0 : i32
    return %c0_i32, %c0_i32_0 : i32, i32
  }
  func.func @transform_5(%arg0: i32) -> (i32, i32) {
    %c0_i32 = arith.constant 0 : i32
    %c0_i32_0 = arith.constant 0 : i32
    %c0_i32_1 = arith.constant 0 : i32
    return %c0_i32, %c0_i32_0 : i32, i32
  }
  func.func @transform_6(%arg0: i32) -> (i32, i32) {
    %c0_i32 = arith.constant 0 : i32
    %c0_i32_0 = arith.constant 0 : i32
    %c0_i32_1 = arith.constant 0 : i32
    return %c0_i32, %c0_i32_0 : i32, i32
  }
  func.func @transform_7(%arg0: i32) -> (i32, i32) {
    %c0_i32 = arith.constant 0 : i32
    %c0_i32_0 = arith.constant 0 : i32
    return %arg0, %c0_i32 : i32, i32
  }
}

module attributes {stable_mosaic.version = 11 : i64} {
  func.func @_fused_mlp_kernel(%arg0: i32, %arg1: memref<8x32xf32, #tpu.memory_space<vmem>>, %arg2: memref<32x64xf32, #tpu.memory_space<vmem>>, %arg3: memref<1x64xf32, #tpu.memory_space<vmem>>, %arg4: memref<64x32xf32, #tpu.memory_space<vmem>>, %arg5: memref<1x32xf32, #tpu.memory_space<vmem>>, %arg6: memref<32x16xf32, #tpu.memory_space<vmem>>, %arg7: memref<1x16xf32, #tpu.memory_space<vmem>>, %arg8: memref<8x16xf32, #tpu.memory_space<vmem>>) attributes {dimension_semantics = [#tpu.dimension_semantics<parallel>], iteration_bounds = array<i64: 1>, scalar_prefetch = 0 : i64, scratch_operands = 0 : i64, tpu.core_type = #tpu.core_type<tc>, window_params = [{transform_indices = @transform_0, window_bounds = array<i64: 8, 32>}, {pipeline_mode = #tpu.pipeline_mode<synchronous>, transform_indices = @transform_1, window_bounds = array<i64: 32, 64>}, {pipeline_mode = #tpu.pipeline_mode<synchronous>, transform_indices = @transform_2, window_bounds = array<i64: 1, 64>}, {pipeline_mode = #tpu.pipeline_mode<synchronous>, transform_indices = @transform_3, window_bounds = array<i64: 64, 32>}, {pipeline_mode = #tpu.pipeline_mode<synchronous>, transform_indices = @transform_4, window_bounds = array<i64: 1, 32>}, {pipeline_mode = #tpu.pipeline_mode<synchronous>, transform_indices = @transform_5, window_bounds = array<i64: 32, 16>}, {pipeline_mode = #tpu.pipeline_mode<synchronous>, transform_indices = @transform_6, window_bounds = array<i64: 1, 16>}, {transform_indices = @transform_7, window_bounds = array<i64: 8, 16>}]} {
    %c0 = arith.constant 0 : index
    %c0_0 = arith.constant 0 : index
    %0 = vector.load %arg1[%c0, %c0_0] : memref<8x32xf32, #tpu.memory_space<vmem>>, vector<8x32xf32>
    %c0_1 = arith.constant 0 : index
    %c0_2 = arith.constant 0 : index
    %1 = vector.load %arg2[%c0_1, %c0_2] : memref<32x64xf32, #tpu.memory_space<vmem>>, vector<32x64xf32>
    %c0_3 = arith.constant 0 : index
    %c0_4 = arith.constant 0 : index
    %2 = vector.load %arg3[%c0_3, %c0_4] : memref<1x64xf32, #tpu.memory_space<vmem>>, vector<1x64xf32>
    %cst = arith.constant dense<0.000000e+00> : vector<8x64xf32>
    %3 = tpu.matmul %0, %1, %cst {dimension_numbers = #tpu.dot_dimension_numbers<[1], [0], [0], [1], [0, 0, 1, 1], [], []>} : vector<8x32xf32>, vector<32x64xf32>, vector<8x64xf32> -> vector<8x64xf32>
    %4 = vector.broadcast %2 : vector<1x64xf32> to vector<8x64xf32>
    %5 = arith.addf %3, %4 : vector<8x64xf32>
    %cst_5 = arith.constant 0.00999999977 : f32
    %6 = vector.broadcast %cst_5 : f32 to vector<8x64xf32>
    %7 = arith.mulf %6, %5 : vector<8x64xf32>
    %8 = arith.maximumf %5, %7 : vector<8x64xf32>
    %c0_6 = arith.constant 0 : index
    %c0_7 = arith.constant 0 : index
    %9 = vector.load %arg4[%c0_6, %c0_7] : memref<64x32xf32, #tpu.memory_space<vmem>>, vector<64x32xf32>
    %c0_8 = arith.constant 0 : index
    %c0_9 = arith.constant 0 : index
    %10 = vector.load %arg5[%c0_8, %c0_9] : memref<1x32xf32, #tpu.memory_space<vmem>>, vector<1x32xf32>
    %cst_10 = arith.constant dense<0.000000e+00> : vector<8x32xf32>
    %11 = tpu.matmul %8, %9, %cst_10 {dimension_numbers = #tpu.dot_dimension_numbers<[1], [0], [0], [1], [0, 0, 1, 1], [], []>} : vector<8x64xf32>, vector<64x32xf32>, vector<8x32xf32> -> vector<8x32xf32>
    %12 = vector.broadcast %10 : vector<1x32xf32> to vector<8x32xf32>
    %13 = arith.addf %11, %12 : vector<8x32xf32>
    %cst_11 = arith.constant 0.00999999977 : f32
    %14 = vector.broadcast %cst_11 : f32 to vector<8x32xf32>
    %15 = arith.mulf %14, %13 : vector<8x32xf32>
    %16 = arith.maximumf %13, %15 : vector<8x32xf32>
    %c0_12 = arith.constant 0 : index
    %c0_13 = arith.constant 0 : index
    %17 = vector.load %arg6[%c0_12, %c0_13] : memref<32x16xf32, #tpu.memory_space<vmem>>, vector<32x16xf32>
    %c0_14 = arith.constant 0 : index
    %c0_15 = arith.constant 0 : index
    %18 = vector.load %arg7[%c0_14, %c0_15] : memref<1x16xf32, #tpu.memory_space<vmem>>, vector<1x16xf32>
    %cst_16 = arith.constant dense<0.000000e+00> : vector<8x16xf32>
    %19 = tpu.matmul %16, %17, %cst_16 {dimension_numbers = #tpu.dot_dimension_numbers<[1], [0], [0], [1], [0, 0, 1, 1], [], []>} : vector<8x32xf32>, vector<32x16xf32>, vector<8x16xf32> -> vector<8x16xf32>
    %20 = vector.broadcast %18 : vector<1x16xf32> to vector<8x16xf32>
    %21 = arith.addf %19, %20 : vector<8x16xf32>
    %c0_17 = arith.constant 0 : index
    %c0_18 = arith.constant 0 : index
    %22 = vector.load %arg8[%c0_17, %c0_18] : memref<8x16xf32, #tpu.memory_space<vmem>>, vector<8x16xf32>
    tpu.vector_store %arg8[%c0_17, %c0_18], %21 {strides = array<i32>} : memref<8x16xf32, #tpu.memory_space<vmem>>, vector<8x16xf32>,
    return
  }
  func.func @transform_0(%arg0: i32) -> (i32, i32) {
    %c0_i32 = arith.constant 0 : i32
    %c0_i32_0 = arith.constant 0 : i32
    return %arg0, %c0_i32 : i32, i32
  }
  func.func @transform_1(%arg0: i32) -> (i32, i32) {
    %c0_i32 = arith.constant 0 : i32
    %c0_i32_0 = arith.constant 0 : i32
    %c0_i32_1 = arith.constant 0 : i32
    return %c0_i32, %c0_i32_0 : i32, i32
  }
  func.func @transform_2(%arg0: i32) -> (i32, i32) {
    %c0_i32 = arith.constant 0 : i32
    %c0_i32_0 = arith.constant 0 : i32
    %c0_i32_1 = arith.constant 0 : i32
    return %c0_i32, %c0_i32_0 : i32, i32
  }
  func.func @transform_3(%arg0: i32) -> (i32, i32) {
    %c0_i32 = arith.constant 0 : i32
    %c0_i32_0 = arith.constant 0 : i32
    %c0_i32_1 = arith.constant 0 : i32
    return %c0_i32, %c0_i32_0 : i32, i32
  }
  func.func @transform_4(%arg0: i32) -> (i32, i32) {
    %c0_i32 = arith.constant 0 : i32
    %c0_i32_0 = arith.constant 0 : i32
    %c0_i32_1 = arith.constant 0 : i32
    return %c0_i32, %c0_i32_0 : i32, i32
  }
  func.func @transform_5(%arg0: i32) -> (i32, i32) {
    %c0_i32 = arith.constant 0 : i32
    %c0_i32_0 = arith.constant 0 : i32
    %c0_i32_1 = arith.constant 0 : i32
    return %c0_i32, %c0_i32_0 : i32, i32
  }
  func.func @transform_6(%arg0: i32) -> (i32, i32) {
    %c0_i32 = arith.constant 0 : i32
    %c0_i32_0 = arith.constant 0 : i32
    %c0_i32_1 = arith.constant 0 : i32
    return %c0_i32, %c0_i32_0 : i32, i32
  }
  func.func @transform_7(%arg0: i32) -> (i32, i32) {
    %c0_i32 = arith.constant 0 : i32
    %c0_i32_0 = arith.constant 0 : i32
    return %arg0, %c0_i32 : i32, i32
  }
}

</mosaic_0001>

<llo_original>
// kernel: tpu_custom_call.1
$region0: #{tpu_custom_call.1}
  #allocation0 [shape = 'u32[]', space=smem, size = 0x4, offset = 0x4, fixed_abs, tag = 'smem constant byte address 0x4 - core index']
  #allocation1 [shape = 'u32[72,128]{1,0:T(1,128)}', space=vmem, size = 0x9000, scoped, tag = 'internal scratch']
  %s0 = inlined_call_operand.vmem [shape: f32[8,32], index: 0, kind: input, shape index: {}]
  %s1 = inlined_call_operand.vmem [shape: f32[32,64], index: 1, kind: input, shape index: {}]
  %s2 = inlined_call_operand.vmem [shape: f32[1,64], index: 2, kind: input, shape index: {}]
  %s3 = inlined_call_operand.vmem [shape: f32[64,32], index: 3, kind: input, shape index: {}]
  %s4 = inlined_call_operand.vmem [shape: f32[1,32], index: 4, kind: input, shape index: {}]
  %s5 = inlined_call_operand.vmem [shape: f32[32,16], index: 5, kind: input, shape index: {}]
  %s6 = inlined_call_operand.vmem [shape: f32[1,16], index: 6, kind: input, shape index: {}]
  %s7 = inlined_call_operand.hbm [shape: f32[8,16], index: 7, kind: output, shape index: {}]
  %s8 = sld [smem:[#allocation0]]
  $region38: #{tpu_custom_call.1} parent=0
    _
  %s10 = ssub.s32 1, %s8
  %s11 = scalar_select 0, %s10, %s8
  $region1: #{tpu_custom_call.1} parent=0
    #allocation2 [shape = 'u8[4096]{0}', space=vmem, size = 0x1000, scoped, tag = 'output window, operand 0, single buffered']
    #allocation3 [shape = 's32[1]{0}', space=sflag, size = 0x4, scoped, tag = 'scoped memory for tpu_custom_call.1']
    %12 = vsyncpa [#allocation3], 0
    // Predicated region
    $region2: #{tpu_custom_call.1} parent=1 // pred_check
      _
    $region3: #{tpu_custom_call.1} parent=1 // pred_check_branch
      %14 = sbr.rel (0) target = $region5
    $region4: #{tpu_custom_call.1} parent=1 // pred_region
      _
    $region5: #{tpu_custom_call.1} parent=1 // pred_fallthru
      _
    // Predicated region
    $region6: #{tpu_custom_call.1} parent=1 // pred_check
      _
    $region7: #{tpu_custom_call.1} parent=1 // pred_check_branch
      %16 = sbr.rel (0) target = $region9
    $region8: #{tpu_custom_call.1} parent=1 // pred_region
      _
    $region9: #{tpu_custom_call.1} parent=1 // pred_fallthru
      _
    // Predicated region
    $region10: #{tpu_custom_call.1} parent=1 // pred_check
      _
    $region11: #{tpu_custom_call.1} parent=1 // pred_check_branch
      %18 = sbr.rel (0) target = $region13
    $region12: #{tpu_custom_call.1} parent=1 // pred_region
      _
    $region13: #{tpu_custom_call.1} parent=1 // pred_fallthru
      _
    // Predicated region
    $region14: #{tpu_custom_call.1} parent=1 // pred_check
      _
    $region15: #{tpu_custom_call.1} parent=1 // pred_check_branch
      %20 = sbr.rel (0) target = $region17
    $region16: #{tpu_custom_call.1} parent=1 // pred_region
      _
    $region17: #{tpu_custom_call.1} parent=1 // pred_fallthru
      _
    // Predicated region
    $region18: #{tpu_custom_call.1} parent=1 // pred_check
      _
    $region19: #{tpu_custom_call.1} parent=1 // pred_check_branch
      %22 = sbr.rel (0) target = $region21
    $region20: #{tpu_custom_call.1} parent=1 // pred_region
      _
    $region21: #{tpu_custom_call.1} parent=1 // pred_fallthru
      _
    // Predicated region
    $region22: #{tpu_custom_call.1} parent=1 // pred_check
      _
    $region23: #{tpu_custom_call.1} parent=1 // pred_check_branch
      %24 = sbr.rel (0) target = $region25
    $region24: #{tpu_custom_call.1} parent=1 // pred_region
      _
    $region25: #{tpu_custom_call.1} parent=1 // pred_fallthru
      _
    // Predicated region
    $region26: #{tpu_custom_call.1} parent=1 // pred_check
      _
    $region27: #{tpu_custom_call.1} parent=1 // pred_check_branch
      %26 = sbr.rel (0) target = $region29
    $region28: #{tpu_custom_call.1} parent=1 // pred_region
      _
    $region29: #{tpu_custom_call.1} parent=1 // pred_fallthru
      _
    %v27 = vld [vmem:[%s0] sm:$0xff]
    %v28 = vld [vmem:[%s1] sm:$0xff]
    %v29 = vld [vmem:[%s1 + $0x8] sm:$0xff]
    %v30 = vld [vmem:[%s1 + $0x10] sm:$0xff]
    %v31 = vld [vmem:[%s1 + $0x18] sm:$0xff]
    %v32 = vld [vmem:[%s2] sm:$0x1]
    %v34 = vperm.slane %v32, 0
    %vm36 = vcmask 261120
    %v38 = vsel %vm36, %v27, 0
    %40 = vmatpush.msra.mxu0 0.0
    %41 = vmatpush.msra.mxu0 0.0
    %42 = vmatpush.msra.mxu0 0.0
    %43 = vmatpush.msra.mxu0 0.0
    %44 = vmatpush.msra.mxu0 0.0
    %45 = vmatpush.msra.mxu0 0.0
    %46 = vmatpush.msra.mxu0 0.0
    %47 = vmatpush.msra.mxu0 0.0
    %48 = vmatpush.msra.mxu0 0.0
    %49 = vmatpush.msra.mxu0 0.0
    %50 = vmatpush.msra.mxu0 0.0
    %51 = vmatpush.msra.mxu0 0.0
    %52 = vmatpush.msra.mxu0 %v31
    %53 = vmatpush.msra.mxu0 %v30
    %54 = vmatpush.msra.mxu0 %v29
    %55 = vmatpush.msra.mxu0 %v28
    %56 = vmatmul.f32.gmra.mxu0 %v38
    %v57 = vpop.f32.mrf.mxu0
    %v58 = vadd.f32 %v34, %v57
    %59 = vdwg.mxu0
    %v60 = vmul.f32 %v58, 0.01
    %v61 = vmax.f32 %v58, %v60
    %v62 = vld [vmem:[%s3] sm:$0xff]
    %v63 = vld [vmem:[%s3 + $0x8] sm:$0xff]
    %v64 = vld [vmem:[%s3 + $0x10] sm:$0xff]
    %v65 = vld [vmem:[%s3 + $0x18] sm:$0xff]
    %v66 = vld [vmem:[%s3 + $0x20] sm:$0xff]
    %v67 = vld [vmem:[%s3 + $0x28] sm:$0xff]
    %v68 = vld [vmem:[%s3 + $0x30] sm:$0xff]
    %v69 = vld [vmem:[%s3 + $0x38] sm:$0xff]
    %v70 = vld [vmem:[%s4] sm:$0x1]
    %v72 = vperm.slane %v70, 0
    %vm74 = vcmask 523264
    %v76 = vsel %vm74, %v61, 0
    %78 = vmatpush.msra.mxu0 0.0
    %79 = vmatpush.msra.mxu0 0.0
    %80 = vmatpush.msra.mxu0 0.0
    %81 = vmatpush.msra.mxu0 0.0
    %82 = vmatpush.msra.mxu0 0.0
    %83 = vmatpush.msra.mxu0 0.0
    %84 = vmatpush.msra.mxu0 0.0
    %85 = vmatpush.msra.mxu0 0.0
    %86 = vmatpush.msra.mxu0 %v69
    %87 = vmatpush.msra.mxu0 %v68
    %88 = vmatpush.msra.mxu0 %v67
    %89 = vmatpush.msra.mxu0 %v66
    %90 = vmatpush.msra.mxu0 %v65
    %91 = vmatpush.msra.mxu0 %v64
    %92 = vmatpush.msra.mxu0 %v63
    %93 = vmatpush.msra.mxu0 %v62
    %94 = vmatmul.f32.gmra.mxu0 %v76
    %v95 = vpop.f32.mrf.mxu0
    %v96 = vadd.f32 %v72, %v95
    %97 = vdwg.mxu0
    %v98 = vmul.f32 %v96, 0.01
    %v99 = vmax.f32 %v96, %v98
    %v100 = vld [vmem:[%s5] sm:$0xff]
    %v101 = vld [vmem:[%s5 + $0x8] sm:$0xff]
    %v102 = vld [vmem:[%s5 + $0x10] sm:$0xff]
    %v103 = vld [vmem:[%s5 + $0x18] sm:$0xff]
    %v104 = vld [vmem:[%s6] sm:$0x1]
    %v106 = vperm.slane %v104, 0
    %v109 = vsel %vm36, %v99, 0
    %111 = vmatpush.msra.mxu0 0.0
    %112 = vmatpush.msra.mxu0 0.0
    %113 = vmatpush.msra.mxu0 0.0
    %114 = vmatpush.msra.mxu0 0.0
    %115 = vmatpush.msra.mxu0 0.0
    %116 = vmatpush.msra.mxu0 0.0
    %117 = vmatpush.msra.mxu0 0.0
    %118 = vmatpush.msra.mxu0 0.0
    %119 = vmatpush.msra.mxu0 0.0
    %120 = vmatpush.msra.mxu0 0.0
    %121 = vmatpush.msra.mxu0 0.0
    %122 = vmatpush.msra.mxu0 0.0
    %123 = vmatpush.msra.mxu0 %v103
    %124 = vmatpush.msra.mxu0 %v102
    %125 = vmatpush.msra.mxu0 %v101
    %126 = vmatpush.msra.mxu0 %v100
    %127 = vmatmul.f32.gmra.mxu0 %v109
    %v128 = vpop.f32.mrf.mxu0
    %v129 = vadd.f32 %v106, %v128
    %130 = vdwg.mxu0
    %vm131 = vcmask 130048
    %132 = vst.msk [vmem:[#allocation2] sm:$0xff] %vm131, %v129
    // Predicated region
    $region30: #{tpu_custom_call.1} parent=1 // pred_check
      _
    $region31: #{tpu_custom_call.1} parent=1 // pred_check_branch
      %134 = sbr.rel (0) target = $region33
    $region32: #{tpu_custom_call.1} parent=1 // pred_region
      %136 = vsyncadd [#allocation3], 0
      %s138 = sshll.u32 [#allocation2], 4
      %s139 = int_to_ptr.vmem [resolvable:$true] %s138
      %s140 = sshll.u32 %s7, 4
      %s141 = int_to_ptr.hbm [resolvable:$true] %s140
      %143 = dma.vmem_to_hbm [thread:$0]  %s139, 128, %s141, [#allocation3]
    $region33: #{tpu_custom_call.1} parent=1 // pred_fallthru
      _
    // Predicated region
    $region34: #{tpu_custom_call.1} parent=1 // pred_check
      _
    $region35: #{tpu_custom_call.1} parent=1 // pred_check_branch
      %145 = sbr.rel (0) target = $region37
    $region36: #{tpu_custom_call.1} parent=1 // pred_region
      %147 = dma.done [#allocation3], 128
    $region37: #{tpu_custom_call.1} parent=1 // pred_fallthru
      _
    %148 = vsyncpa [#allocation3], 1

// kernel: tpu_custom_call.1
$region0: #{tpu_custom_call.1}
  #allocation0 [shape = 'u32[]', space=smem, size = 0x4, offset = 0x4, fixed_abs, tag = 'smem constant byte address 0x4 - core index']
  #allocation1 [shape = 'u32[72,128]{1,0:T(1,128)}', space=vmem, size = 0x9000, scoped, tag = 'internal scratch']
  %s0 = inlined_call_operand.vmem [shape: f32[8,32], index: 0, kind: input, shape index: {}]
  %s1 = inlined_call_operand.vmem [shape: f32[32,64], index: 1, kind: input, shape index: {}]
  %s2 = inlined_call_operand.vmem [shape: f32[1,64], index: 2, kind: input, shape index: {}]
  %s3 = inlined_call_operand.vmem [shape: f32[64,32], index: 3, kind: input, shape index: {}]
  %s4 = inlined_call_operand.vmem [shape: f32[1,32], index: 4, kind: input, shape index: {}]
  %s5 = inlined_call_operand.vmem [shape: f32[32,16], index: 5, kind: input, shape index: {}]
  %s6 = inlined_call_operand.vmem [shape: f32[1,16], index: 6, kind: input, shape index: {}]
  %s7 = inlined_call_operand.hbm [shape: f32[8,16], index: 7, kind: output, shape index: {}]
  %s8 = sld [smem:[#allocation0]]
  $region38: #{tpu_custom_call.1} parent=0
    _
  %s10 = ssub.s32 1, %s8
  %s11 = scalar_select 0, %s10, %s8
  $region1: #{tpu_custom_call.1} parent=0
    #allocation2 [shape = 'u8[4096]{0}', space=vmem, size = 0x1000, scoped, tag = 'output window, operand 0, single buffered']
    #allocation3 [shape = 's32[1]{0}', space=sflag, size = 0x4, scoped, tag = 'scoped memory for tpu_custom_call.1']
    %12 = vsyncpa [#allocation3], 0
    // Predicated region
    $region2: #{tpu_custom_call.1} parent=1 // pred_check
      _
    $region3: #{tpu_custom_call.1} parent=1 // pred_check_branch
      %14 = sbr.rel (0) target = $region5
    $region4: #{tpu_custom_call.1} parent=1 // pred_region
      _
    $region5: #{tpu_custom_call.1} parent=1 // pred_fallthru
      _
    // Predicated region
    $region6: #{tpu_custom_call.1} parent=1 // pred_check
      _
    $region7: #{tpu_custom_call.1} parent=1 // pred_check_branch
      %16 = sbr.rel (0) target = $region9
    $region8: #{tpu_custom_call.1} parent=1 // pred_region
      _
    $region9: #{tpu_custom_call.1} parent=1 // pred_fallthru
      _
    // Predicated region
    $region10: #{tpu_custom_call.1} parent=1 // pred_check
      _
    $region11: #{tpu_custom_call.1} parent=1 // pred_check_branch
      %18 = sbr.rel (0) target = $region13
    $region12: #{tpu_custom_call.1} parent=1 // pred_region
      _
    $region13: #{tpu_custom_call.1} parent=1 // pred_fallthru
      _
    // Predicated region
    $region14: #{tpu_custom_call.1} parent=1 // pred_check
      _
    $region15: #{tpu_custom_call.1} parent=1 // pred_check_branch
      %20 = sbr.rel (0) target = $region17
    $region16: #{tpu_custom_call.1} parent=1 // pred_region
      _
    $region17: #{tpu_custom_call.1} parent=1 // pred_fallthru
      _
    // Predicated region
    $region18: #{tpu_custom_call.1} parent=1 // pred_check
      _
    $region19: #{tpu_custom_call.1} parent=1 // pred_check_branch
      %22 = sbr.rel (0) target = $region21
    $region20: #{tpu_custom_call.1} parent=1 // pred_region
      _
    $region21: #{tpu_custom_call.1} parent=1 // pred_fallthru
      _
    // Predicated region
    $region22: #{tpu_custom_call.1} parent=1 // pred_check
      _
    $region23: #{tpu_custom_call.1} parent=1 // pred_check_branch
      %24 = sbr.rel (0) target = $region25
    $region24: #{tpu_custom_call.1} parent=1 // pred_region
      _
    $region25: #{tpu_custom_call.1} parent=1 // pred_fallthru
      _
    // Predicated region
    $region26: #{tpu_custom_call.1} parent=1 // pred_check
      _
    $region27: #{tpu_custom_call.1} parent=1 // pred_check_branch
      %26 = sbr.rel (0) target = $region29
    $region28: #{tpu_custom_call.1} parent=1 // pred_region
      _
    $region29: #{tpu_custom_call.1} parent=1 // pred_fallthru
      _
    %v27 = vld [vmem:[%s0] sm:$0xff]
    %v28 = vld [vmem:[%s1] sm:$0xff]
    %v29 = vld [vmem:[%s1 + $0x8] sm:$0xff]
    %v30 = vld [vmem:[%s1 + $0x10] sm:$0xff]
    %v31 = vld [vmem:[%s1 + $0x18] sm:$0xff]
    %v32 = vld [vmem:[%s2] sm:$0x1]
    %v34 = vperm.slane %v32, 0
    %vm36 = vcmask 261120
    %v38 = vsel %vm36, %v27, 0
    %40 = vmatpush.msra.mxu0 0.0
    %41 = vmatpush.msra.mxu0 0.0
    %42 = vmatpush.msra.mxu0 0.0
    %43 = vmatpush.msra.mxu0 0.0
    %44 = vmatpush.msra.mxu0 0.0
    %45 = vmatpush.msra.mxu0 0.0
    %46 = vmatpush.msra.mxu0 0.0
    %47 = vmatpush.msra.mxu0 0.0
    %48 = vmatpush.msra.mxu0 0.0
    %49 = vmatpush.msra.mxu0 0.0
    %50 = vmatpush.msra.mxu0 0.0
    %51 = vmatpush.msra.mxu0 0.0
    %52 = vmatpush.msra.mxu0 %v31
    %53 = vmatpush.msra.mxu0 %v30
    %54 = vmatpush.msra.mxu0 %v29
    %55 = vmatpush.msra.mxu0 %v28
    %56 = vmatmul.f32.gmra.mxu0 %v38
    %v57 = vpop.f32.mrf.mxu0
    %v58 = vadd.f32 %v34, %v57
    %59 = vdwg.mxu0
    %v60 = vmul.f32 %v58, 0.01
    %v61 = vmax.f32 %v58, %v60
    %v62 = vld [vmem:[%s3] sm:$0xff]
    %v63 = vld [vmem:[%s3 + $0x8] sm:$0xff]
    %v64 = vld [vmem:[%s3 + $0x10] sm:$0xff]
    %v65 = vld [vmem:[%s3 + $0x18] sm:$0xff]
    %v66 = vld [vmem:[%s3 + $0x20] sm:$0xff]
    %v67 = vld [vmem:[%s3 + $0x28] sm:$0xff]
    %v68 = vld [vmem:[%s3 + $0x30] sm:$0xff]
    %v69 = vld [vmem:[%s3 + $0x38] sm:$0xff]
    %v70 = vld [vmem:[%s4] sm:$0x1]
    %v72 = vperm.slane %v70, 0
    %vm74 = vcmask 523264
    %v76 = vsel %vm74, %v61, 0
    %78 = vmatpush.msra.mxu0 0.0
    %79 = vmatpush.msra.mxu0 0.0
    %80 = vmatpush.msra.mxu0 0.0
    %81 = vmatpush.msra.mxu0 0.0
    %82 = vmatpush.msra.mxu0 0.0
    %83 = vmatpush.msra.mxu0 0.0
    %84 = vmatpush.msra.mxu0 0.0
    %85 = vmatpush.msra.mxu0 0.0
    %86 = vmatpush.msra.mxu0 %v69
    %87 = vmatpush.msra.mxu0 %v68
    %88 = vmatpush.msra.mxu0 %v67
    %89 = vmatpush.msra.mxu0 %v66
    %90 = vmatpush.msra.mxu0 %v65
    %91 = vmatpush.msra.mxu0 %v64
    %92 = vmatpush.msra.mxu0 %v63
    %93 = vmatpush.msra.mxu0 %v62
    %94 = vmatmul.f32.gmra.mxu0 %v76
    %v95 = vpop.f32.mrf.mxu0
    %v96 = vadd.f32 %v72, %v95
    %97 = vdwg.mxu0
    %v98 = vmul.f32 %v96, 0.01
    %v99 = vmax.f32 %v96, %v98
    %v100 = vld [vmem:[%s5] sm:$0xff]
    %v101 = vld [vmem:[%s5 + $0x8] sm:$0xff]
    %v102 = vld [vmem:[%s5 + $0x10] sm:$0xff]
    %v103 = vld [vmem:[%s5 + $0x18] sm:$0xff]
    %v104 = vld [vmem:[%s6] sm:$0x1]
    %v106 = vperm.slane %v104, 0
    %v109 = vsel %vm36, %v99, 0
    %111 = vmatpush.msra.mxu0 0.0
    %112 = vmatpush.msra.mxu0 0.0
    %113 = vmatpush.msra.mxu0 0.0
    %114 = vmatpush.msra.mxu0 0.0
    %115 = vmatpush.msra.mxu0 0.0
    %116 = vmatpush.msra.mxu0 0.0
    %117 = vmatpush.msra.mxu0 0.0
    %118 = vmatpush.msra.mxu0 0.0
    %119 = vmatpush.msra.mxu0 0.0
    %120 = vmatpush.msra.mxu0 0.0
    %121 = vmatpush.msra.mxu0 0.0
    %122 = vmatpush.msra.mxu0 0.0
    %123 = vmatpush.msra.mxu0 %v103
    %124 = vmatpush.msra.mxu0 %v102
    %125 = vmatpush.msra.mxu0 %v101
    %126 = vmatpush.msra.mxu0 %v100
    %127 = vmatmul.f32.gmra.mxu0 %v109
    %v128 = vpop.f32.mrf.mxu0
    %v129 = vadd.f32 %v106, %v128
    %130 = vdwg.mxu0
    %vm131 = vcmask 130048
    %132 = vst.msk [vmem:[#allocation2] sm:$0xff] %vm131, %v129
    // Predicated region
    $region30: #{tpu_custom_call.1} parent=1 // pred_check
      _
    $region31: #{tpu_custom_call.1} parent=1 // pred_check_branch
      %134 = sbr.rel (0) target = $region33
    $region32: #{tpu_custom_call.1} parent=1 // pred_region
      %136 = vsyncadd [#allocation3], 0
      %s138 = sshll.u32 [#allocation2], 4
      %s139 = int_to_ptr.vmem [resolvable:$true] %s138
      %s140 = sshll.u32 %s7, 4
      %s141 = int_to_ptr.hbm [resolvable:$true] %s140
      %143 = dma.vmem_to_hbm [thread:$0]  %s139, 128, %s141, [#allocation3]
    $region33: #{tpu_custom_call.1} parent=1 // pred_fallthru
      _
    // Predicated region
    $region34: #{tpu_custom_call.1} parent=1 // pred_check
      _
    $region35: #{tpu_custom_call.1} parent=1 // pred_check_branch
      %145 = sbr.rel (0) target = $region37
    $region36: #{tpu_custom_call.1} parent=1 // pred_region
      %147 = dma.done [#allocation3], 128
    $region37: #{tpu_custom_call.1} parent=1 // pred_fallthru
      _
    %148 = vsyncpa [#allocation3], 1

</llo_original>
